<compile_context>
chip_gen: v6e
topology: v6e:2x2x1
jax: 0.10.0
libtpu: 0.0.40
codegen_flags: <defaults>
</compile_context>

<pallas_src>
import jax
import jax.numpy as jnp
from jax.experimental import pallas as pl
from jax.experimental.pallas import tpu as pltpu

EPS = 1e-6


def dwtconv_kernel(x_ref, w_ref, cb_ref, g_ref, be_ref, o_ref):
    # x_ref: (4C, T) phase-stacked columns [a|b|c|d] (bf16 or f32)
    # w_ref: (out_ch, 4C) Haar-folded 1x1-conv weight (same dtype as x)
    # Haar DWT + concat + 1x1 conv folded into a single MXU matmul, f32 accumulate.
    y = jnp.dot(w_ref[...], x_ref[...], preferred_element_type=jnp.float32)  # (out_ch, T)
    y = y + cb_ref[...]                                                      # conv bias

    # channels-first LayerNorm == normalize over the sublane (out_ch) axis.
    # var via E[y^2] - mu^2: one fewer full-tile VPU subtract before the reduce.
    mu = jnp.mean(y, axis=0, keepdims=True)
    m2 = jnp.mean(y * y, axis=0, keepdims=True)
    var = jnp.maximum(m2 - mu * mu, 0.0)
    yn = (y - mu) * jax.lax.rsqrt(var + EPS)
    yn = yn * g_ref[...] + be_ref[...]

    # SiLU; lane-dense (out_ch, T) store (T = lane axis).
    o_ref[...] = (yn * jax.nn.sigmoid(yn)).astype(o_ref.dtype)


def _choose_tile(n_lanes, c4, out_ch, in_bytes, out_bytes,
                 max_tile=2048, vmem_budget_bytes=16 << 20):
    """Largest lane tile (multiple of 128) whose double-buffered working set — input
    block, output block and f32 intermediates — fits the budget. No minimum block-count
    heuristic: v5e/v6e have a single TC (grid is a serial loop) and v7x's two TCs are
    covered by the (B, tiles) parallel grid."""
    if n_lanes <= 128:
        return n_lanes                              # single full-extent block on the lane axis
    bytes_per_col = (2 * in_bytes * c4              # double-buffered input block
                     + 2 * out_bytes * out_ch       # double-buffered output block
                     + 3 * 4 * out_ch)              # f32 intermediates (y, yn, ...)
    t = (vmem_budget_bytes // bytes_per_col) // 128 * 128
    t = max(128, min(t, max_tile, n_lanes // 128 * 128))
    return int(t)


def dwt_conv(x, conv_w, conv_b, ln_w, ln_b, *, dma_dtype=jnp.bfloat16, max_tile=2048):
    """x: (B, C, H, W) NCHW. conv_w: (out_ch, 2C, 1, 1). Returns (B, out_ch, H//2, W//2)."""
    B, C, H, W = x.shape
    out_ch = conv_w.shape[0]
    Ho, Wo = H // 2, W // 2
    # TODO(synk): odd H/W would need the extra boundary coefficient that
    # pytorch_wavelets mode='zero' keeps; even spatial dims assumed here.
    N = Ho * Wo
    C4 = 4 * C

    # --- single relayout pass, done in the DMA dtype so it writes half the bytes:
    # (B,C,H,W) -> (B, 4C, Ho*Wo), channel rows stacked as phases [a|b|c|d]
    #   a = x[:,:,0::2,0::2], b = x[:,:,0::2,1::2], c = x[:,:,1::2,0::2], d = x[:,:,1::2,1::2]
    xr = x.astype(dma_dtype).reshape(B, C, Ho, 2, Wo, 2)
    xin = jnp.transpose(xr, (0, 3, 5, 1, 2, 4)).reshape(B, C4, N)

    # --- fold the Haar transform into the 1x1-conv weights (f32 fold, then DMA dtype):
    # y = W1 @ yL + W2 @ (yL + yHL + yLH + yHH);  yL = 0.5*(a+b+c+d), detail sum = 2*a
    w_mat = conv_w[:, :, 0, 0].astype(jnp.float32)           # (out_ch, 2C)
    w1, w2 = w_mat[:, :C], w_mat[:, C:]
    w_fold = jnp.concatenate(
        [0.5 * w1 + 2.0 * w2, 0.5 * w1, 0.5 * w1, 0.5 * w1], axis=1).astype(dma_dtype)

    cb = conv_b.reshape(out_ch, 1).astype(jnp.float32)
    g = ln_w.reshape(out_ch, 1).astype(jnp.float32)
    be = ln_b.reshape(out_ch, 1).astype(jnp.float32)

    in_bytes = jnp.dtype(dma_dtype).itemsize
    out_bytes = jnp.dtype(x.dtype).itemsize
    tile = _choose_tile(N, C4, out_ch, in_bytes, out_bytes, max_tile=max_tile)
    n_tiles = pl.cdiv(N, tile)

    # VMEM limit derived from the actual working set (double buffers + f32 intermediates
    # + params), capped well under v7x's 64 MiB physical VMEM.
    ws = (2 * C4 * tile * in_bytes + 2 * out_ch * tile * out_bytes
          + 3 * out_ch * tile * 4 + 2 * (out_ch * C4 * in_bytes + 3 * out_ch * 4))
    vmem_limit = int(min(40 << 20, max(24 << 20, 2 * ws + (4 << 20))))

    col_spec = pl.BlockSpec((pl.Squeezed(), C4, tile), lambda b, i: (b, 0, i))
    full = lambda shape: pl.BlockSpec(shape, lambda b, i: (0, 0))

    out = pl.pallas_call(
        dwtconv_kernel,
        out_shape=jax.ShapeDtypeStruct((B, out_ch, N), x.dtype),
        grid=(B, n_tiles),
        in_specs=[col_spec,
                  full((out_ch, C4)),
                  full((out_ch, 1)), full((out_ch, 1)), full((out_ch, 1))],
        out_specs=pl.BlockSpec((pl.Squeezed(), out_ch, tile), lambda b, i: (b, 0, i)),
        compiler_params=pltpu.CompilerParams(
            dimension_semantics=("parallel", "parallel"),
            vmem_limit_bytes=vmem_limit),
    )(xin, w_fold, cb, g, be)

    # Output is already in its final channels-first layout; this reshape is free.
    return out.reshape(B, out_ch, Ho, Wo)


def dwt_conv_reference(x, conv_w, conv_b, ln_w, ln_b):
    """Pure-JAX (f32) reference mirroring the PyTorch forward (NCHW)."""
    a = x[:, :, 0::2, 0::2]
    b = x[:, :, 0::2, 1::2]
    c = x[:, :, 1::2, 0::2]
    d = x[:, :, 1::2, 1::2]
    ll = 0.5 * (a + b + c + d)
    lh = 0.5 * (a + b - c - d)
    hl = 0.5 * (a - b + c - d)
    hh = 0.5 * (a - b - c + d)
    cat = jnp.concatenate([ll, ll + hl + lh + hh], axis=1)       # (B, 2C, Ho, Wo)
    w = conv_w[:, :, 0, 0]                                       # (out_ch, 2C)
    y = jnp.einsum('oc,bchw->bohw', w, cat) + conv_b[None, :, None, None]
    mu = jnp.mean(y, axis=1, keepdims=True)
    var = jnp.mean(jnp.square(y - mu), axis=1, keepdims=True)
    yn = (y - mu) / jnp.sqrt(var + EPS)
    yn = ln_w[None, :, None, None] * yn + ln_b[None, :, None, None]
    return yn * jax.nn.sigmoid(yn)


if __name__ == "__main__":
    B, in_ch, H, W = 2, 4, 16, 16
    out_ch = 8

    key = jax.random.PRNGKey(0)
    kx, kw, kb = jax.random.split(key, 3)

    x = jax.random.normal(kx, (B, in_ch, H, W), dtype=jnp.float32)

    # Deterministic parameter init (module shapes: Conv2d(2*in_ch, out_ch, 1), LayerNorm(out_ch))
    fan_in = 2 * in_ch
    conv_w = jax.random.normal(kw, (out_ch, fan_in, 1, 1), dtype=jnp.float32) / jnp.sqrt(fan_in)
    conv_b = 0.01 * jax.random.normal(kb, (out_ch,), dtype=jnp.float32)
    ln_w = jnp.ones((out_ch,), dtype=jnp.float32)
    ln_b = jnp.zeros((out_ch,), dtype=jnp.float32)

    out = dwt_conv(x, conv_w, conv_b, ln_w, ln_b)          # bf16 DMA/MXU path (default)
    out = jax.block_until_ready(out)

    ref = dwt_conv_reference(x, conv_w, conv_b, ln_w, ln_b)
    assert out.shape == (B, out_ch, H // 2, W // 2)
    # bf16 inputs on the matmul path -> loose-but-structural tolerance vs the f32 reference
    assert jnp.allclose(out, ref, atol=3e-2, rtol=3e-2), "mismatch vs reference"

    print("KERNEL_OK")
</pallas_src>

<mosaic_0001>
module attributes {stable_mosaic.version = 11 : i64} {
  func.func @dwtconv_kernel(%arg0: i32, %arg1: i32, %arg2: memref<1x16x64xbf16, #tpu.memory_space<vmem>>, %arg3: memref<8x16xbf16, #tpu.memory_space<vmem>>, %arg4: memref<8x1xf32, #tpu.memory_space<vmem>>, %arg5: memref<8x1xf32, #tpu.memory_space<vmem>>, %arg6: memref<8x1xf32, #tpu.memory_space<vmem>>, %arg7: memref<1x8x64xf32, #tpu.memory_space<vmem>>) attributes {dimension_semantics = [#tpu.dimension_semantics<parallel>, #tpu.dimension_semantics<parallel>], iteration_bounds = array<i64: 2, 1>, scalar_prefetch = 0 : i64, scratch_operands = 0 : i64, tpu.core_type = #tpu.core_type<tc>, window_params = [{transform_indices = @transform_0, window_bounds = array<i64: 1, 16, 64>}, {pipeline_mode = #tpu.pipeline_mode<synchronous>, transform_indices = @transform_1, window_bounds = array<i64: 8, 16>}, {pipeline_mode = #tpu.pipeline_mode<synchronous>, transform_indices = @transform_2, window_bounds = array<i64: 8, 1>}, {pipeline_mode = #tpu.pipeline_mode<synchronous>, transform_indices = @transform_3, window_bounds = array<i64: 8, 1>}, {pipeline_mode = #tpu.pipeline_mode<synchronous>, transform_indices = @transform_4, window_bounds = array<i64: 8, 1>}, {transform_indices = @transform_5, window_bounds = array<i64: 1, 8, 64>}]} {
    %c0 = arith.constant 0 : index
    %c0_0 = arith.constant 0 : index
    %0 = vector.load %arg3[%c0, %c0_0] : memref<8x16xbf16, #tpu.memory_space<vmem>>, vector<8x16xbf16>
    %c0_1 = arith.constant 0 : index
    %c0_2 = arith.constant 0 : index
    %c0_3 = arith.constant 0 : index
    %1 = vector.load %arg2[%c0_1, %c0_2, %c0_3] : memref<1x16x64xbf16, #tpu.memory_space<vmem>>, vector<1x16x64xbf16>
    %2 = vector.shape_cast %1 : vector<1x16x64xbf16> to vector<16x64xbf16>
    %cst = arith.constant dense<0.000000e+00> : vector<8x64xf32>
    %3 = tpu.matmul %0, %2, %cst {dimension_numbers = #tpu.dot_dimension_numbers<[1], [0], [0], [1], [0, 0, 1, 1], [], []>} : vector<8x16xbf16>, vector<16x64xbf16>, vector<8x64xf32> -> vector<8x64xf32>
    %c0_4 = arith.constant 0 : index
    %c0_5 = arith.constant 0 : index
    %4 = vector.load %arg4[%c0_4, %c0_5] : memref<8x1xf32, #tpu.memory_space<vmem>>, vector<8x1xf32>
    %5 = vector.broadcast %4 : vector<8x1xf32> to vector<8x64xf32>
    %6 = arith.addf %3, %5 : vector<8x64xf32>
    %cst_6 = arith.constant dense<0.000000e+00> : vector<64xf32>
    %7 = vector.multi_reduction <add>, %6, %cst_6 [0] : vector<8x64xf32> to vector<64xf32>
    %8 = vector.shape_cast %7 : vector<64xf32> to vector<1x64xf32>
    %cst_7 = arith.constant 8.000000e+00 : f32
    %9 = vector.broadcast %cst_7 : f32 to vector<1x64xf32>
    %10 = arith.divf %8, %9 : vector<1x64xf32>
    %11 = arith.mulf %6, %6 : vector<8x64xf32>
    %cst_8 = arith.constant dense<0.000000e+00> : vector<64xf32>
    %12 = vector.multi_reduction <add>, %11, %cst_8 [0] : vector<8x64xf32> to vector<64xf32>
    %13 = vector.shape_cast %12 : vector<64xf32> to vector<1x64xf32>
    %cst_9 = arith.constant 8.000000e+00 : f32
    %14 = vector.broadcast %cst_9 : f32 to vector<1x64xf32>
    %15 = arith.divf %13, %14 : vector<1x64xf32>
    %16 = arith.mulf %10, %10 : vector<1x64xf32>
    %17 = arith.subf %15, %16 : vector<1x64xf32>
    %cst_10 = arith.constant 0.000000e+00 : f32
    %18 = vector.broadcast %cst_10 : f32 to vector<1x64xf32>
    %19 = arith.maximumf %17, %18 : vector<1x64xf32>
    %20 = vector.broadcast %10 : vector<1x64xf32> to vector<8x64xf32>
    %21 = arith.subf %6, %20 : vector<8x64xf32>
    %cst_11 = arith.constant 9.99999997E-7 : f32
    %22 = vector.broadcast %cst_11 : f32 to vector<1x64xf32>
    %23 = arith.addf %19, %22 : vector<1x64xf32>
    %24 = math.rsqrt %23 : vector<1x64xf32>
    %25 = vector.broadcast %24 : vector<1x64xf32> to vector<8x64xf32>
    %26 = arith.mulf %21, %25 : vector<8x64xf32>
    %c0_12 = arith.constant 0 : index
    %c0_13 = arith.constant 0 : index
    %27 = vector.load %arg5[%c0_12, %c0_13] : memref<8x1xf32, #tpu.memory_space<vmem>>, vector<8x1xf32>
    %28 = vector.broadcast %27 : vector<8x1xf32> to vector<8x64xf32>
    %29 = arith.mulf %26, %28 : vector<8x64xf32>
    %c0_14 = arith.constant 0 : index
    %c0_15 = arith.constant 0 : index
    %30 = vector.load %arg6[%c0_14, %c0_15] : memref<8x1xf32, #tpu.memory_space<vmem>>, vector<8x1xf32>
    %31 = vector.broadcast %30 : vector<8x1xf32> to vector<8x64xf32>
    %32 = arith.addf %29, %31 : vector<8x64xf32>
    %33 = arith.negf %32 : vector<8x64xf32>
    %34 = math.exp %33 : vector<8x64xf32>
    %cst_16 = arith.constant 1.000000e+00 : f32
    %35 = vector.broadcast %cst_16 : f32 to vector<8x64xf32>
    %36 = arith.addf %35, %34 : vector<8x64xf32>
    %37 = arith.divf %35, %36 : vector<8x64xf32>
    %38 = arith.mulf %32, %37 : vector<8x64xf32>
    %c0_17 = arith.constant 0 : index
    %c0_18 = arith.constant 0 : index
    %c0_19 = arith.constant 0 : index
    %39 = vector.load %arg7[%c0_17, %c0_18, %c0_19] : memref<1x8x64xf32, #tpu.memory_space<vmem>>, vector<1x8x64xf32>
    %40 = vector.shape_cast %39 : vector<1x8x64xf32> to vector<8x64xf32>
    %41 = vector.shape_cast %38 : vector<8x64xf32> to vector<1x8x64xf32>
    tpu.vector_store %arg7[%c0_17, %c0_18, %c0_19], %41 {strides = array<i32>} : memref<1x8x64xf32, #tpu.memory_space<vmem>>, vector<1x8x64xf32>,
    return
  }
  func.func @transform_0(%arg0: i32, %arg1: i32) -> (i32, i32, i32) {
    %c0_i32 = arith.constant 0 : i32
    %c0_i32_0 = arith.constant 0 : i32
    return %arg0, %c0_i32, %arg1 : i32, i32, i32
  }
  func.func @transform_1(%arg0: i32, %arg1: i32) -> (i32, i32) {
    %c0_i32 = arith.constant 0 : i32
    %c0_i32_0 = arith.constant 0 : i32
    %c0_i32_1 = arith.constant 0 : i32
    return %c0_i32, %c0_i32_0 : i32, i32
  }
  func.func @transform_2(%arg0: i32, %arg1: i32) -> (i32, i32) {
    %c0_i32 = arith.constant 0 : i32
    %c0_i32_0 = arith.constant 0 : i32
    %c0_i32_1 = arith.constant 0 : i32
    return %c0_i32, %c0_i32_0 : i32, i32
  }
  func.func @transform_3(%arg0: i32, %arg1: i32) -> (i32, i32) {
    %c0_i32 = arith.constant 0 : i32
    %c0_i32_0 = arith.constant 0 : i32
    %c0_i32_1 = arith.constant 0 : i32
    return %c0_i32, %c0_i32_0 : i32, i32
  }
  func.func @transform_4(%arg0: i32, %arg1: i32) -> (i32, i32) {
    %c0_i32 = arith.constant 0 : i32
    %c0_i32_0 = arith.constant 0 : i32
    %c0_i32_1 = arith.constant 0 : i32
    return %c0_i32, %c0_i32_0 : i32, i32
  }
  func.func @transform_5(%arg0: i32, %arg1: i32) -> (i32, i32, i32) {
    %c0_i32 = arith.constant 0 : i32
    %c0_i32_0 = arith.constant 0 : i32
    return %arg0, %c0_i32, %arg1 : i32, i32, i32
  }
}

</mosaic_0001>

<llo_original>
// kernel: tpu_custom_call.1
$region0: #{tpu_custom_call.1}
  #allocation0 [shape = 'u32[]', space=smem, size = 0x4, offset = 0x4, fixed_abs, tag = 'smem constant byte address 0x4 - core index']
  #allocation1 [shape = 'u32[144,128]{1,0:T(1,128)}', space=vmem, size = 0x12000, scoped, tag = 'internal scratch']
  %s0 = inlined_call_operand.vmem [shape: bf16[2,16,64], index: 0, kind: input, shape index: {}]
  %s1 = inlined_call_operand.vmem [shape: bf16[8,16], index: 1, kind: input, shape index: {}]
  %s2 = inlined_call_operand.vmem [shape: f32[8,1], index: 2, kind: input, shape index: {}]
  %s3 = inlined_call_operand.vmem [shape: f32[8,1], index: 3, kind: input, shape index: {}]
  %s4 = inlined_call_operand.vmem [shape: f32[8,1], index: 4, kind: input, shape index: {}]
  %s5 = inlined_call_operand.hbm [shape: f32[2,8,64], index: 5, kind: output, shape index: {}]
  %s6 = sld [smem:[#allocation0]]
  $region53: #{tpu_custom_call.1} parent=0
    _
  %s8 = ssub.s32 1, %s6
  %s9 = scalar_select 0, %s8, %s6
  $region1: #{tpu_custom_call.1} parent=0
    #allocation2 [shape = 'u8[8192]{0}', space=vmem, size = 0x2000, scoped, tag = 'output window, operand 0']
    #allocation3 [shape = 's32[2]{0}', space=sflag, size = 0x8, scoped, tag = 'scoped memory for tpu_custom_call.1']
    %10 = vsyncpa [#allocation3], 0
    %s11 = scalar_lea.sflag [#allocation3], 1
    %12 = vsyncpa %s11, 0
    loop: start=0, step=1, limit=4
    $region2: #{tpu_custom_call.1} parent=1 // loop_pre_header
      _
    $region3: #{tpu_custom_call.1} parent=1 // loop_header
      %s14 = sphi 0, %s18
      %p15 = scmp.ge.s32.totalorder %s14, 4
      %s21 = sphi 0, %s33
      %s22 = sphi 0, %s29
      %s23 = sphi 0, %s21
      %s24 = sphi 0, %s22
      %s25 = sphi 0, %s23
      %s26 = sphi 0, %s24
      %s38 = sphi 0, %s40
      %s41 = sphi 0, %s38
      %s42 = sphi 0, %s41
      %s58 = sphi 0, %s42
      %s62 = sphi 0, %s62
      %s64 = sphi 0, %s62
      %s65 = sphi 0, %s64
      %s79 = sphi 0, %s65
      %s83 = sphi 0, %s83
      %s85 = sphi 0, %s83
      %s86 = sphi 0, %s85
      %s100 = sphi 0, %s86
      %s104 = sphi 0, %s104
      %s106 = sphi 0, %s104
      %s107 = sphi 0, %s106
      %s121 = sphi 0, %s107
      %s125 = sphi 0, %s125
      %s127 = sphi 0, %s125
      %s128 = sphi 0, %s127
      %s142 = sphi 0, %s128
      %s150 = sphi 0, %s152
      %s153 = sphi 0, %s150
      %s154 = sphi 0, %s153
      %s170 = sphi 0, %s154
    $region4: #{tpu_custom_call.1} parent=1 // loop_header_branch
      %17 = sbr.rel (%p15) target = $region8
    $region5: #{tpu_custom_call.1} parent=1 // loop_body
      %s19 = ssub.s32 %s14, 1
      %s20 = ssub.s32 %s14, 2
      %s27 = sadd.s32 1, %s22
      %p28 = scmp.ge.s32.totalorder %s27, 1
      %s29 = scalar_select %p28, 0, %s27
      %s30 = sadd.s32 1, %s21
      %s31 = scalar_select %p28, %s30, %s21
      %p32 = scmp.ge.s32.totalorder %s31, 2
      %s33 = scalar_select %p32, 0, %s31
      %s34 = ssub.s32 %s21, %s33
      %s35 = ssub.s32 %s22, %s29
      %s36 = sor.u32 %s34, %s35
      %p37 = scmp.eq.s32.totalorder %s36, 0
      %s39 = sadd.s32 %s38, 1
      %s40 = scalar_select %p37, %s38, %s39
      %p43 = pneg %p37
      %p44 = scmp.eq.s32.totalorder %s14, 1
      %p45 = por %p43, %p44
      %p46 = scmp.ne.s32.totalorder %s38, %s41
      %p47 = scmp.eq.s32.totalorder %s14, 0
      %p48 = por %p46, %p47
      %p49 = scmp.ne.s32.totalorder %s38, %s41
      %p50 = scmp.eq.s32.totalorder %s19, 1
      %p51 = por %p49, %p50
      %p52 = scmp.ne.s32.totalorder %s41, %s42
      %p53 = scmp.eq.s32.totalorder %s19, 0
      %p54 = por %p52, %p53
      %p55 = scmp.ne.s32.totalorder %s41, %s42
      %p56 = scmp.eq.s32.totalorder %s20, 1
      %p57 = por %p55, %p56
      %p59 = scmp.ne.s32.totalorder %s42, %s58
      %p60 = scmp.eq.s32.totalorder %s20, 0
      %p61 = por %p59, %p60
      %s63 = sadd.s32 %s62, 1
      %p66 = scmp.eq.s32.totalorder %s14, 1
      %p67 = scmp.ne.s32.totalorder %s62, %s64
      %p68 = scmp.eq.s32.totalorder %s14, 0
      %p69 = por %p67, %p68
      %p70 = scmp.ne.s32.totalorder %s62, %s64
      %p71 = scmp.eq.s32.totalorder %s19, 1
      %p72 = por %p70, %p71
      %p73 = scmp.ne.s32.totalorder %s64, %s65
      %p74 = scmp.eq.s32.totalorder %s19, 0
      %p75 = por %p73, %p74
      %p76 = scmp.ne.s32.totalorder %s64, %s65
      %p77 = scmp.eq.s32.totalorder %s20, 1
      %p78 = por %p76, %p77
      %p80 = scmp.ne.s32.totalorder %s65, %s79
      %p81 = scmp.eq.s32.totalorder %s20, 0
      %p82 = por %p80, %p81
      %s84 = sadd.s32 %s83, 1
      %p87 = scmp.eq.s32.totalorder %s14, 1
      %p88 = scmp.ne.s32.totalorder %s83, %s85
      %p89 = scmp.eq.s32.totalorder %s14, 0
      %p90 = por %p88, %p89
      %p91 = scmp.ne.s32.totalorder %s83, %s85
      %p92 = scmp.eq.s32.totalorder %s19, 1
      %p93 = por %p91, %p92
      %p94 = scmp.ne.s32.totalorder %s85, %s86
      %p95 = scmp.eq.s32.totalorder %s19, 0
      %p96 = por %p94, %p95
      %p97 = scmp.ne.s32.totalorder %s85, %s86
      %p98 = scmp.eq.s32.totalorder %s20, 1
      %p99 = por %p97, %p98
      %p101 = scmp.ne.s32.totalorder %s86, %s100
      %p102 = scmp.eq.s32.totalorder %s20, 0
      %p103 = por %p101, %p102
      %s105 = sadd.s32 %s104, 1
      %p108 = scmp.eq.s32.totalorder %s14, 1
      %p109 = scmp.ne.s32.totalorder %s104, %s106
      %p110 = scmp.eq.s32.totalorder %s14, 0
      %p111 = por %p109, %p110
      %p112 = scmp.ne.s32.totalorder %s104, %s106
      %p113 = scmp.eq.s32.totalorder %s19, 1
      %p114 = por %p112, %p113
      %p115 = scmp.ne.s32.totalorder %s106, %s107
      %p116 = scmp.eq.s32.totalorder %s19, 0
      %p117 = por %p115, %p116
      %p118 = scmp.ne.s32.totalorder %s106, %s107
      %p119 = scmp.eq.s32.totalorder %s20, 1
      %p120 = por %p118, %p119
      %p122 = scmp.ne.s32.totalorder %s107, %s121
      %p123 = scmp.eq.s32.totalorder %s20, 0
      %p124 = por %p122, %p123
      %s126 = sadd.s32 %s125, 1
      %p129 = scmp.eq.s32.totalorder %s14, 1
      %p130 = scmp.ne.s32.totalorder %s125, %s127
      %p131 = scmp.eq.s32.totalorder %s14, 0
      %p132 = por %p130, %p131
      %p133 = scmp.ne.s32.totalorder %s125, %s127
      %p134 = scmp.eq.s32.totalorder %s19, 1
      %p135 = por %p133, %p134
      %p136 = scmp.ne.s32.totalorder %s127, %s128
      %p137 = scmp.eq.s32.totalorder %s19, 0
      %p138 = por %p136, %p137
      %p139 = scmp.ne.s32.totalorder %s127, %s128
      %p140 = scmp.eq.s32.totalorder %s20, 1
      %p141 = por %p139, %p140
      %p143 = scmp.ne.s32.totalorder %s128, %s142
      %p144 = scmp.eq.s32.totalorder %s20, 0
      %p145 = por %p143, %p144
      %s146 = ssub.s32 %s21, %s33
      %s147 = ssub.s32 %s22, %s29
      %s148 = sor.u32 %s146, %s147
      %p149 = scmp.eq.s32.totalorder %s148, 0
      %s151 = sadd.s32 %s150, 1
      %s152 = scalar_select %p149, %s150, %s151
      %p155 = pneg %p149
      %p156 = scmp.eq.s32.totalorder %s14, 1
      %p157 = por %p155, %p156
      %p158 = scmp.ne.s32.totalorder %s150, %s153
      %p159 = scmp.eq.s32.totalorder %s14, 0
      %p160 = por %p158, %p159
      %p161 = scmp.ne.s32.totalorder %s150, %s153
      %p162 = scmp.eq.s32.totalorder %s19, 1
      %p163 = por %p161, %p162
      %p164 = scmp.ne.s32.totalorder %s153, %s154
      %p165 = scmp.eq.s32.totalorder %s19, 0
      %p166 = por %p164, %p165
      %p167 = scmp.ne.s32.totalorder %s153, %s154
      %p168 = scmp.eq.s32.totalorder %s20, 1
      %p169 = por %p167, %p168
      %p171 = scmp.ne.s32.totalorder %s154, %s170
      %p172 = scmp.eq.s32.totalorder %s20, 0
      %p173 = por %p171, %p172
      %p174 = scmp.le.s32.totalorder 1, %s14
      %p175 = scmp.lt.s32.totalorder %s14, 3
      %p176 = pnand %p174, %p175
      %p177 = pneg %p176
      // Predicated region
      $region9: #{tpu_custom_call.1} parent=5 // pred_check
        _
      $region10: #{tpu_custom_call.1} parent=5 // pred_check_branch
        %179 = sbr.rel (%p176) target = $region12
      $region11: #{tpu_custom_call.1} parent=5 // pred_region
        %s180 = ssub.s32 %s14, 1
        // Predicated region
        $region13: #{tpu_custom_call.1} parent=11 // pred_check
          %p181 = pneg %p75
        $region14: #{tpu_custom_call.1} parent=11 // pred_check_branch
          %183 = sbr.rel (%p181) target = $region16
        $region15: #{tpu_custom_call.1} parent=11 // pred_region
          _
        $region16: #{tpu_custom_call.1} parent=11 // pred_fallthru
          _
        // Predicated region
        $region17: #{tpu_custom_call.1} parent=11 // pred_check
          %p184 = pneg %p96
        $region18: #{tpu_custom_call.1} parent=11 // pred_check_branch
          %186 = sbr.rel (%p184) target = $region20
        $region19: #{tpu_custom_call.1} parent=11 // pred_region
          _
        $region20: #{tpu_custom_call.1} parent=11 // pred_fallthru
          _
        // Predicated region
        $region21: #{tpu_custom_call.1} parent=11 // pred_check
          %p187 = pneg %p117
        $region22: #{tpu_custom_call.1} parent=11 // pred_check_branch
          %189 = sbr.rel (%p187) target = $region24
        $region23: #{tpu_custom_call.1} parent=11 // pred_region
          _
        $region24: #{tpu_custom_call.1} parent=11 // pred_fallthru
          _
        // Predicated region
        $region25: #{tpu_custom_call.1} parent=11 // pred_check
          %p190 = pneg %p138
        $region26: #{tpu_custom_call.1} parent=11 // pred_check_branch
          %192 = sbr.rel (%p190) target = $region28
        $region27: #{tpu_custom_call.1} parent=11 // pred_region
          _
        $region28: #{tpu_custom_call.1} parent=11 // pred_fallthru
          _
      $region12: #{tpu_custom_call.1} parent=5 // pred_fallthru
        _
      %p193 = scmp.lt.s32.totalorder %s14, 2
      // Predicated region
      $region29: #{tpu_custom_call.1} parent=5 // pred_check
        %p194 = pneg %p193
      $region30: #{tpu_custom_call.1} parent=5 // pred_check_branch
        %196 = sbr.rel (%p194) target = $region32
      $region31: #{tpu_custom_call.1} parent=5 // pred_region
        // Predicated region
        $region33: #{tpu_custom_call.1} parent=31 // pred_check
          %p197 = pneg %p48
        $region34: #{tpu_custom_call.1} parent=31 // pred_check_branch
          %199 = sbr.rel (%p197) target = $region36
        $region35: #{tpu_custom_call.1} parent=31 // pred_region
          %p200 = scmp.lt.s32.totalorder %s21, 1
          %s201 = scalar_select %p200, %s21, 1
          %p202 = scmp.lt.s32.totalorder %s22, 0
          %s203 = scalar_select %p202, %s22, 0
          %s204 = smul.addr %s201, 2
          %s205 = sadd.s32 %s203, %s204
          %s206 = smul.addr %s205, 4
          %s207 = scalar_lea.vmem %s0, %s206
        $region36: #{tpu_custom_call.1} parent=31 // pred_fallthru
          _
      $region32: #{tpu_custom_call.1} parent=5 // pred_fallthru
        _
      %p208 = scmp.le.s32.totalorder 1, %s14
      %p209 = scmp.lt.s32.totalorder %s14, 3
      %p210 = pnand %p208, %p209
      %p211 = pneg %p210
      // Predicated region
      $region37: #{tpu_custom_call.1} parent=5 // pred_check
        _
      $region38: #{tpu_custom_call.1} parent=5 // pred_check_branch
        %213 = sbr.rel (%p210) target = $region40
      $region39: #{tpu_custom_call.1} parent=5 // pred_region
        %s214 = ssub.s32 %s14, 1
        %p215 = scmp.lt.s32.totalorder %s23, 1
        %s216 = scalar_select %p215, %s23, 1
        %p217 = scmp.lt.s32.totalorder %s24, 0
        %s218 = scalar_select %p217, %s24, 0
        %s219 = smul.addr %s216, 2
        %s220 = sadd.s32 %s218, %s219
        %s221 = smul.addr %s220, 4
        %s222 = scalar_lea.vmem %s0, %s221
        %p223 = pneg %p54
        %p224 = pneg %p51
        %p225 = pneg %p75
        %p226 = pneg %p72
        %p227 = pneg %p96
        %p228 = pneg %p93
        %p229 = pneg %p117
        %p230 = pneg %p114
        %p231 = pneg %p138
        %p232 = pneg %p135
        %p233 = pneg %p166
        %p234 = pneg %p163
        %s235 = sand.u32 %s153, 1
        %s236 = scalar_lea.sflag [#allocation3], %s235
        %s237 = sand.u32 %s153, 1
        %s238 = smul.addr %s237, 8
        %s239 = scalar_lea.vmem [#allocation2], %s238
        %p240 = scmp.lt.s32.totalorder %s23, 1
        %s241 = scalar_select %p240, %s23, 1
        %p242 = scmp.lt.s32.totalorder %s24, 0
        %s243 = scalar_select %p242, %s24, 0
        %s244 = smul.addr %s241, 2
        %s245 = sadd.s32 %s243, %s244
        %s246 = smul.addr %s245, 4
        %s247 = scalar_lea.vmem %s0, %s246
        %v249 = vld [vmem:[%s1] sm:$0xf]
        %v250 = vld [vmem:[%s247] sm:$0xf]
        %v251 = vld [vmem:[%s247 + $0x4] sm:$0xf]
        %v252 = vld [vmem:[%s2] sm:$0xff]
        %254 = vset.pattern.permute.xlu0 0
        %255 = vperm.xlu0 %254, %v252
        %v256 = vpop.permute.xlu0 %255
        %v260 = vunpack.c.l.b16 %v250
        %v261 = vunpack.c.l.b16 %v251
        %v262 = vpack.c.b16 %v261, %v260
        %vm264 = vcmask 130048
        %v266 = vsel %vm264, %v249, 0
        %268 = vmatprep.subr.bf16.mxu0 0
        %269 = vmatpush1.bf16.msra.mxu0 0
        %270 = vmatprep.subr.bf16.mxu0 0
        %271 = vmatpush1.bf16.msra.mxu0 0
        %272 = vmatprep.subr.bf16.mxu0 0
        %273 = vmatpush1.bf16.msra.mxu0 0
        %274 = vmatprep.subr.bf16.mxu0 0
        %275 = vmatpush1.bf16.msra.mxu0 0
        %276 = vmatprep.subr.bf16.mxu0 0
        %277 = vmatpush1.bf16.msra.mxu0 0
        %278 = vmatprep.subr.bf16.mxu0 0
        %279 = vmatpush1.bf16.msra.mxu0 0
        %280 = vmatprep.subr.bf16.mxu0 0
        %281 = vmatpush1.bf16.msra.mxu0 0
        %282 = vmatprep.subr.bf16.mxu0 0
        %283 = vmatpush1.bf16.msra.mxu0 %v262
        %284 = vmatprep.subr.bf16.mxu0 0
        %285 = vmatpush2.bf16.msra.mxu0 0
        %286 = vmatprep.subr.bf16.mxu0 0
        %287 = vmatpush2.bf16.msra.mxu0 0
        %288 = vmatprep.subr.bf16.mxu0 0
        %289 = vmatpush2.bf16.msra.mxu0 0
        %290 = vmatprep.subr.bf16.mxu0 0
        %291 = vmatpush2.bf16.msra.mxu0 0
        %292 = vmatprep.subr.bf16.mxu0 0
        %293 = vmatpush2.bf16.msra.mxu0 0
        %294 = vmatprep.subr.bf16.mxu0 0
        %295 = vmatpush2.bf16.msra.mxu0 0
        %296 = vmatprep.subr.bf16.mxu0 0
        %297 = vmatpush2.bf16.msra.mxu0 0
        %298 = vmatprep.subr.bf16.mxu0 0
        %299 = vmatpush2.bf16.msra.mxu0 0
        %300 = vmatprep.mubr.bf16.mxu0 0
        %301 = vmatmul.mubr.bf16.gmra.mxu0 %v266
        %v302 = vpop.f32.mrf.mxu0
        %v303 = vadd.f32 %v256, %v302
        %v304 = vpop.f32.mrf.mxu0
        %v305 = vpop.f32.mrf.mxu0
        %v306 = vpop.f32.mrf.mxu0
        %307 = vdwg.mxu0
        %vm308 = vcmask 523264
        %v309 = vsel %vm308, %v303, 0.0
        %v310 = vrot.slane %v309, 4
        %v311 = vadd.f32 %v309, %v310
        %v312 = vrot.slane %v311, 2
        %v313 = vadd.f32 %v311, %v312
        %v314 = vrot.slane %v313, 1
        %v315 = vadd.f32 %v313, %v314
        %v316 = vrcp.pop 8.0
        %v317 = vmul.f32 %v315, %v316
        %v318 = vmul.f32 %v303, %v303
        %v319 = vsel %vm308, %v318, 0.0
        %v320 = vrot.slane %v319, 4
        %v321 = vadd.f32 %v319, %v320
        %v322 = vrot.slane %v321, 2
        %v323 = vadd.f32 %v321, %v322
        %v324 = vrot.slane %v323, 1
        %v325 = vadd.f32 %v323, %v324
        %v326 = vmul.f32 %v325, %v316
        %v327 = vmul.f32 %v317, %v317
        %v328 = vsub.f32 %v326, %v327
        %v329 = vmax.f32 %v328, 0.0
        %v330 = vsub.f32 %v303, %v317
        %v331 = vadd.f32 %v329, 1e-06
        %v332 = vrsqrt.pop %v331
        %v333 = vmul.f32 %v330, %v332
        %v334 = vld [vmem:[%s3] sm:$0xff]
        %336 = vset.pattern.permute.xlu0 0
        %337 = vperm.xlu0 %336, %v334
        %v338 = vpop.permute.xlu0 %337
        %v340 = vmul.f32 %v333, %v338
        %v341 = vld [vmem:[%s4] sm:$0xff]
        %343 = vset.pattern.permute.xlu0 0
        %344 = vperm.xlu0 %343, %v341
        %v345 = vpop.permute.xlu0 %344
        %v347 = vadd.f32 %v340, %v345
        %v348 = vxor.u32 %v347, 2147483648
        %v349 = vmul.f32 %v348, 1.442695
        %v350 = vpow.pop %v349
        %v351 = vadd.f32 %v350, 1.0
        %v352 = vrcp.pop %v351
        %v353 = vmul.f32 1.0, %v352
        %v354 = vmul.f32 %v347, %v353
        %355 = vst.msk [vmem:[%s239] sm:$0xff] %vm308, %v354
        %s356 = sand.u32 %s153, 1
        %s357 = scalar_lea.sflag [#allocation3], %s356
        %s358 = sand.u32 %s153, 1
        %s359 = smul.addr %s358, 8
        %s360 = scalar_lea.vmem [#allocation2], %s359
        // Predicated region
        $region41: #{tpu_custom_call.1} parent=39 // pred_check
          %p361 = pneg %p163
        $region42: #{tpu_custom_call.1} parent=39 // pred_check_branch
          %363 = sbr.rel (%p361) target = $region44
        $region43: #{tpu_custom_call.1} parent=39 // pred_region
          %s365 = ssub.s32 128, 128
          %366 = vsyncadd %s357, %s365
          %s367 = sadd.s32 %s24, %s23
          %s368 = smul.addr %s367, 128
          %s369 = scalar_lea.hbm %s5, %s368
          %s371 = sshll.u32 %s360, 4
          %s372 = int_to_ptr.vmem [resolvable:$true] %s371
          %374 = dma.vmem_to_hbm [thread:$0]  %s372, 128, %s369, %s357
        $region44: #{tpu_custom_call.1} parent=39 // pred_fallthru
          _
      $region40: #{tpu_custom_call.1} parent=5 // pred_fallthru
        _
      %p375 = scmp.le.s32.totalorder 2, %s14
      // Predicated region
      $region45: #{tpu_custom_call.1} parent=5 // pred_check
        %p376 = pneg %p375
      $region46: #{tpu_custom_call.1} parent=5 // pred_check_branch
        %378 = sbr.rel (%p376) target = $region48
      $region47: #{tpu_custom_call.1} parent=5 // pred_region
        %s379 = ssub.s32 %s14, 2
        // Predicated region
        $region49: #{tpu_custom_call.1} parent=47 // pred_check
          %p380 = pneg %p169
        $region50: #{tpu_custom_call.1} parent=47 // pred_check_branch
          %382 = sbr.rel (%p380) target = $region52
        $region51: #{tpu_custom_call.1} parent=47 // pred_region
          %s383 = sand.u32 %s154, 1
          %s384 = scalar_lea.sflag [#allocation3], %s383
          %s385 = sand.u32 %s154, 1
          %s386 = smul.addr %s385, 8
          %s387 = scalar_lea.vmem [#allocation2], %s386
          %388 = dma.done %s384, 128
        $region52: #{tpu_custom_call.1} parent=47 // pred_fallthru
          _
      $region48: #{tpu_custom_call.1} parent=5 // pred_fallthru
        _
    $region6: #{tpu_custom_call.1} parent=1 // loop_footer
      %s18 = sadd.s32 1, %s14
    $region7: #{tpu_custom_call.1} parent=1 // loop_footer_branch
      %13 = sbr.rel target = $region3
    $region8: #{tpu_custom_call.1} parent=1 // loop_exit
      _
    %389 = vsyncpa [#allocation3], 1
    %s390 = scalar_lea.sflag [#allocation3], 1
    %391 = vsyncpa %s390, 1

</llo_original>
